<compile_context>
chip_gen: v7x
topology: tpu7x:2x2x1
jax: 0.10.0
libtpu: 0.0.40
codegen_flags: <defaults>
</compile_context>

<pallas_src>
import jax
import jax.numpy as jnp
from jax import lax
from jax.experimental import pallas as pl
from jax.experimental.pallas import tpu as pltpu


# ----------------------------------------------------------------------------
# Kernel body
# ----------------------------------------------------------------------------
def _lora_kernel(x_ref, a_ref, b_ref, o_ref):
    # (TM, in_f) contracted with (r, in_f) over in_f -> (TM, r), f32 accum.
    # A stays in its native (r, in_f) layout so the dense in_f stays on the
    # 128-lane axis (no r->128 lane padding).
    # NOTE(perf): verify with pl.lower_as_mlir that Mosaic lowers this
    # trans-RHS contraction natively (no per-step vxpose of the VMEM-resident
    # A); if a transpose shows up inside the grid body, pre-transpose A to
    # (in_f, r) once in prepare_lora_params instead.
    t = lax.dot_general(
        x_ref[...], a_ref[...],
        dimension_numbers=(((1,), (1,)), ((), ())),
        preferred_element_type=jnp.float32,
    )
    # (TM, r) @ (r, TN) -> (TM, TN).  Cast the tiny intermediate to the weight
    # dtype so bf16 inputs take the bf16 MXU path (no-op for f32).
    # NOTE(perf, v7x): MXU push count here is ~independent of r; with 3.2 TB/s
    # HBM the binding slot can flip from DMA to the vmatmul slot -- re-check
    # with a bundle dump.  If it does, bf16 I/O and the out_f grid axis are
    # the levers, not further DMA tuning.
    y = jnp.dot(t.astype(b_ref.dtype), b_ref[...],
                preferred_element_type=jnp.float32)
    o_ref[...] = y.astype(o_ref.dtype)


# ----------------------------------------------------------------------------
# Tiling / VMEM heuristics
# ----------------------------------------------------------------------------
def _cdiv(a, b):
    return (a + b - 1) // b


def _round_up(x, m):
    return ((x + m - 1) // m) * m


def _vmem_limits():
    """(scoped vmem_limit_bytes, tile budget) gated on the chip generation."""
    mib = 1024 * 1024
    try:
        cap = pltpu.get_tpu_info().vmem_capacity_bytes
    except Exception:
        cap = 128 * mib  # conservative default (v5e/v6e physical VMEM)
    if cap >= 96 * mib:
        # v5e / v6e: 128 MiB physical VMEM.  Bigger TM is the whole game on
        # the most HBM-bound generations, so be generous.
        limit = 96 * mib
    else:
        # v7x: 64 MiB physical minus compiler internal scratch headroom.
        limit = min(max(cap - 16 * mib, 32 * mib), 44 * mib)
    return limit, limit - 8 * mib


def _choose_tn(out_f):
    """Tile out_features only when large; tiles stay lane-dense (mult of 128)."""
    if out_f <= 2048 or out_f % 128 != 0:
        # TODO(synk): for out_f < 128 (toy shapes like 32) fold rows into the
        # lane axis with a wrapper reshape so stores are unmasked full-lane
        # vst; irrelevant for production LoRA dims (multiples of 128).
        return out_f
    for tn in range(2048, 127, -128):
        if out_f % tn == 0:
            return tn
    return out_f


def _choose_tm(n, in_f, tn, r, x_bytes, o_bytes, w_bytes, budget):
    """Largest sublane-aligned row tile whose FULL VMEM footprint fits.

    Resident per grid step:
      2 * TM * in_f * x_bytes       double-buffered x tile
      2 * TM * tn   * o_bytes       double-buffered y tile
      2 * r  * (in_f + tn) * w_b    weight blocks (double-buffered even with a
                                    constant index_map)
      TM * r  * 4                   (TM, r) f32 intermediate
      TM * tn * 4                   (TM, tn) f32 pre-cast matmul result
    """
    weights = 2 * r * (in_f + tn) * w_bytes
    per_row = 2 * in_f * x_bytes + 2 * tn * o_bytes + r * 4 + tn * 4
    tm = max(budget - weights, 0) // per_row
    tm = max(8, (tm // 8) * 8)
    # Cap TM so the row axis has >= ~8 grid steps: never a 1-step grid (one
    # idle TC on v7x), and steady-state double-buffering hides DMA.  Per-step
    # overhead (~0.35 us) is cheap by comparison.
    tm = min(tm, _round_up(_cdiv(n, 8), 8))
    return tm


# ----------------------------------------------------------------------------
# Parameter prep + wrapper
# ----------------------------------------------------------------------------
def prepare_lora_params(a_weight, b_weight, r):
    """One-time prep: B is transposed to lane-dense (r, out_f) and the 1/r
    scaling is folded in, so the kernel body carries no per-tile scale."""
    b_scaled_t = (b_weight.T * (1.0 / float(r))).astype(b_weight.dtype)
    return a_weight, b_scaled_t


def lora_linear(x, a, b_scaled_t, *, tm=None, tn=None):
    """LoRA forward: y = (x @ a^T) @ b_scaled_t, with the 1/r already folded
    into b_scaled_t by prepare_lora_params.

    x:           (N, in_features)   f32 or bf16
    a:           (r, in_features)   native PyTorch low_rank_a.weight layout
    b_scaled_t:  (r, out_features)  low_rank_b.weight transposed * (1/r)
    """
    n, in_f = x.shape
    r = a.shape[0]
    out_f = b_scaled_t.shape[1]

    x_b = jnp.dtype(x.dtype).itemsize
    w_b = jnp.dtype(a.dtype).itemsize
    o_b = x_b  # output keeps x's dtype

    vmem_limit, budget = _vmem_limits()
    if tn is None:
        tn = _choose_tn(out_f)
    if tm is None:
        tm = _choose_tm(n, in_f, tn, r, x_b, o_b, w_b, budget)

    grid = (_cdiv(n, tm), _cdiv(out_f, tn))

    cost = pl.CostEstimate(
        flops=2 * n * r * (in_f + out_f),
        transcendentals=0,
        bytes_accessed=n * (in_f * x_b + out_f * o_b)
        + r * (in_f + out_f) * w_b,
    )

    return pl.pallas_call(
        _lora_kernel,
        out_shape=jax.ShapeDtypeStruct((n, out_f), x.dtype),
        grid_spec=pl.GridSpec(
            grid=grid,
            in_specs=[
                # x: tiled over rows; block index constant along j (the inner
                # grid axis) so the same x tile stays VMEM-resident across the
                # out_f tiles (no re-DMA).
                pl.BlockSpec((tm, in_f), lambda i, j: (i, 0)),
                # LoRA weights: same block every step -> DMA'd once, resident.
                pl.BlockSpec((r, in_f), lambda i, j: (0, 0)),
                pl.BlockSpec((r, tn), lambda i, j: (0, j)),
            ],
            # Lane-dense output stores (tn is a multiple of 128 or == out_f).
            out_specs=pl.BlockSpec((tm, tn), lambda i, j: (i, j)),
        ),
        compiler_params=pltpu.CompilerParams(
            # Both axes are independent -> shard across v7x's 2 TensorCores;
            # neutral on single-TC v5e/v6e.
            dimension_semantics=("parallel", "parallel"),
            vmem_limit_bytes=vmem_limit,
        ),
        cost_estimate=cost,
    )(x, a, b_scaled_t)


# ----------------------------------------------------------------------------
# Demo / correctness check
# ----------------------------------------------------------------------------
if __name__ == "__main__":
    # Small shapes consistent with the module (LoRA on a 32->32 linear, r=4).
    N, IN_F, OUT_F, R = 8, 32, 32, 4

    key = jax.random.PRNGKey(0)
    kx, ka, kb = jax.random.split(key, 3)

    x = jax.random.normal(kx, (N, IN_F), dtype=jnp.float32)
    # PyTorch weight shapes: A = low_rank_a.weight (r, in),
    #                        B = low_rank_b.weight (out, r).
    A = jax.random.normal(ka, (R, IN_F), dtype=jnp.float32) * 0.1
    B = jax.random.normal(kb, (OUT_F, R), dtype=jnp.float32) * 0.1

    a_prep, b_prep = prepare_lora_params(A, B, R)
    out = jax.block_until_ready(lora_linear(x, a_prep, b_prep))

    # Reference in plain JAX (matches the PyTorch forward exactly).
    ref = (x @ A.T) @ B.T * (1.0 / R)
    assert out.shape == (N, OUT_F)
    # NOTE: at default precision the MXU runs f32 matmuls as bf16 passes; the
    # tight tolerance holds here only because the contraction dims are tiny.
    # For large in_f either accept bf16-level error or set precision=HIGHEST.
    assert jnp.allclose(out, ref, atol=1e-5, rtol=1e-5)

    print("KERNEL_OK")
</pallas_src>

<mosaic_0001>
module attributes {stable_mosaic.version = 11 : i64} {
  func.func @_lora_kernel(%arg0: i32, %arg1: i32, %arg2: memref<8x32xf32, #tpu.memory_space<vmem>>, %arg3: memref<4x32xf32, #tpu.memory_space<vmem>>, %arg4: memref<4x32xf32, #tpu.memory_space<vmem>>, %arg5: memref<8x32xf32, #tpu.memory_space<vmem>>) attributes {dimension_semantics = [#tpu.dimension_semantics<parallel>, #tpu.dimension_semantics<parallel>], iteration_bounds = array<i64: 1, 1>, scalar_prefetch = 0 : i64, scratch_operands = 0 : i64, tpu.core_type = #tpu.core_type<tc>, window_params = [{transform_indices = @transform_0, window_bounds = array<i64: 8, 32>}, {pipeline_mode = #tpu.pipeline_mode<synchronous>, transform_indices = @transform_1, window_bounds = array<i64: 4, 32>}, {transform_indices = @transform_2, window_bounds = array<i64: 4, 32>}, {transform_indices = @transform_3, window_bounds = array<i64: 8, 32>}]} {
    %c0 = arith.constant 0 : index
    %c0_0 = arith.constant 0 : index
    %0 = vector.load %arg2[%c0, %c0_0] : memref<8x32xf32, #tpu.memory_space<vmem>>, vector<8x32xf32>
    %c0_1 = arith.constant 0 : index
    %c0_2 = arith.constant 0 : index
    %1 = vector.load %arg3[%c0_1, %c0_2] : memref<4x32xf32, #tpu.memory_space<vmem>>, vector<4x32xf32>
    %cst = arith.constant dense<0.000000e+00> : vector<8x4xf32>
    %2 = tpu.matmul %0, %1, %cst {dimension_numbers = #tpu.dot_dimension_numbers<[1], [1], [0], [0], [0, 0, 1, 0], [], []>} : vector<8x32xf32>, vector<4x32xf32>, vector<8x4xf32> -> vector<8x4xf32>
    %c0_3 = arith.constant 0 : index
    %c0_4 = arith.constant 0 : index
    %3 = vector.load %arg4[%c0_3, %c0_4] : memref<4x32xf32, #tpu.memory_space<vmem>>, vector<4x32xf32>
    %cst_5 = arith.constant dense<0.000000e+00> : vector<8x32xf32>
    %4 = tpu.matmul %2, %3, %cst_5 {dimension_numbers = #tpu.dot_dimension_numbers<[1], [0], [0], [1], [0, 0, 1, 1], [], []>} : vector<8x4xf32>, vector<4x32xf32>, vector<8x32xf32> -> vector<8x32xf32>
    %c0_6 = arith.constant 0 : index
    %c0_7 = arith.constant 0 : index
    %5 = vector.load %arg5[%c0_6, %c0_7] : memref<8x32xf32, #tpu.memory_space<vmem>>, vector<8x32xf32>
    tpu.vector_store %arg5[%c0_6, %c0_7], %4 {strides = array<i32>} : memref<8x32xf32, #tpu.memory_space<vmem>>, vector<8x32xf32>,
    return
  }
  func.func @transform_0(%arg0: i32, %arg1: i32) -> (i32, i32) {
    %c0_i32 = arith.constant 0 : i32
    %c0_i32_0 = arith.constant 0 : i32
    return %arg0, %c0_i32 : i32, i32
  }
  func.func @transform_1(%arg0: i32, %arg1: i32) -> (i32, i32) {
    %c0_i32 = arith.constant 0 : i32
    %c0_i32_0 = arith.constant 0 : i32
    %c0_i32_1 = arith.constant 0 : i32
    return %c0_i32, %c0_i32_0 : i32, i32
  }
  func.func @transform_2(%arg0: i32, %arg1: i32) -> (i32, i32) {
    %c0_i32 = arith.constant 0 : i32
    %c0_i32_0 = arith.constant 0 : i32
    return %c0_i32, %arg1 : i32, i32
  }
  func.func @transform_3(%arg0: i32, %arg1: i32) -> (i32, i32) {
    %c0_i32 = arith.constant 0 : i32
    return %arg0, %arg1 : i32, i32
  }
}

</mosaic_0001>

<llo_original>
// kernel: tpu_custom_call.1
$region0: #{tpu_custom_call.1}
  #allocation0 [shape = 'u32[]', space=smem, size = 0x4, offset = 0x4, fixed_abs, tag = 'smem constant byte address 0x4 - core index']
  #allocation1 [shape = 'u32[144,128]{1,0:T(1,128)}', space=vmem, size = 0x12000, scoped, tag = 'internal scratch']
  %s0 = inlined_call_operand.hbm [shape: f32[8,32], index: 0, kind: input, shape index: {}]
  %s1 = inlined_call_operand.hbm [shape: f32[4,32], index: 1, kind: input, shape index: {}]
  %s2 = inlined_call_operand.hbm [shape: f32[4,32], index: 2, kind: input, shape index: {}]
  %s3 = inlined_call_operand.hbm [shape: f32[8,32], index: 3, kind: output, shape index: {}]
  %s4 = sld [smem:[#allocation0]]
  $region34: #{tpu_custom_call.1} parent=0
    _
  %s6 = ssub.s32 1, %s4
  %s7 = scalar_select 0, %s6, %s4
  $region1: #{tpu_custom_call.1} parent=0
    #allocation2 [shape = 'u8[4096]{0}', space=vmem, size = 0x1000, scoped, tag = 'input window, operand 0, single buffered']
    #allocation3 [shape = 's32[1]{0}', space=sflag, size = 0x4, scoped, tag = 'scoped memory for tpu_custom_call.1']
    #allocation4 [shape = 's32[1]{0}', space=sflag, size = 0x4, scoped, tag = 'scoped memory for tpu_custom_call.1']
    #allocation5 [shape = 'u8[2048]{0}', space=vmem, size = 0x800, scoped, tag = 'input window, operand 1, single buffered']
    #allocation6 [shape = 's32[1]{0}', space=sflag, size = 0x4, scoped, tag = 'scoped memory for tpu_custom_call.1']
    #allocation7 [shape = 'u8[2048]{0}', space=vmem, size = 0x800, scoped, tag = 'input window, operand 2, single buffered']
    #allocation8 [shape = 'u8[4096]{0}', space=vmem, size = 0x1000, scoped, tag = 'output window, operand 0, single buffered']
    %8 = vsyncpa [#allocation3], 0
    %9 = vsyncpa [#allocation6], 0
    %10 = vsyncpa [#allocation4], 0
    // Predicated region
    $region2: #{tpu_custom_call.1} parent=1 // pred_check
      _
    $region3: #{tpu_custom_call.1} parent=1 // pred_check_branch
      %12 = sbr.rel (0) target = $region5
    $region4: #{tpu_custom_call.1} parent=1 // pred_region
      %s14 = ssub.s32 128, 128
      %15 = vsyncadd [#allocation3], %s14
      %s17 = sshll.u32 [#allocation2], 4
      %s18 = int_to_ptr.vmem [resolvable:$true] %s17
      %20 = dma.hbm_to_vmem [thread:$0]  %s0, 128, %s18, [#allocation3]
    $region5: #{tpu_custom_call.1} parent=1 // pred_fallthru
      _
    // Predicated region
    $region6: #{tpu_custom_call.1} parent=1 // pred_check
      _
    $region7: #{tpu_custom_call.1} parent=1 // pred_check_branch
      %22 = sbr.rel (0) target = $region9
    $region8: #{tpu_custom_call.1} parent=1 // pred_region
      %s24 = ssub.s32 64, 64
      %25 = vsyncadd [#allocation6], %s24
      %s27 = sshll.u32 [#allocation5], 4
      %s28 = int_to_ptr.vmem [resolvable:$true] %s27
      %30 = dma.hbm_to_vmem [thread:$0]  %s1, 64, %s28, [#allocation6]
    $region9: #{tpu_custom_call.1} parent=1 // pred_fallthru
      _
    // Predicated region
    $region10: #{tpu_custom_call.1} parent=1 // pred_check
      _
    $region11: #{tpu_custom_call.1} parent=1 // pred_check_branch
      %32 = sbr.rel (0) target = $region13
    $region12: #{tpu_custom_call.1} parent=1 // pred_region
      %s34 = ssub.s32 64, 64
      %35 = vsyncadd [#allocation6], %s34
      %s37 = sshll.u32 [#allocation7], 4
      %s38 = int_to_ptr.vmem [resolvable:$true] %s37
      %40 = dma.hbm_to_vmem [thread:$0]  %s2, 64, %s38, [#allocation6]
    $region13: #{tpu_custom_call.1} parent=1 // pred_fallthru
      _
    // Predicated region
    $region14: #{tpu_custom_call.1} parent=1 // pred_check
      _
    $region15: #{tpu_custom_call.1} parent=1 // pred_check_branch
      %42 = sbr.rel (0) target = $region17
    $region16: #{tpu_custom_call.1} parent=1 // pred_region
      %43 = dma.done [#allocation3], 128
    $region17: #{tpu_custom_call.1} parent=1 // pred_fallthru
      _
    // Predicated region
    $region18: #{tpu_custom_call.1} parent=1 // pred_check
      _
    $region19: #{tpu_custom_call.1} parent=1 // pred_check_branch
      %45 = sbr.rel (0) target = $region21
    $region20: #{tpu_custom_call.1} parent=1 // pred_region
      %46 = dma.done [#allocation6], 64
    $region21: #{tpu_custom_call.1} parent=1 // pred_fallthru
      _
    // Predicated region
    $region22: #{tpu_custom_call.1} parent=1 // pred_check
      _
    $region23: #{tpu_custom_call.1} parent=1 // pred_check_branch
      %48 = sbr.rel (0) target = $region25
    $region24: #{tpu_custom_call.1} parent=1 // pred_region
      %49 = dma.done [#allocation6], 64
    $region25: #{tpu_custom_call.1} parent=1 // pred_fallthru
      _
    %v50 = vld [vmem:[#allocation2] sm:$0xff]
    %v51 = vld [vmem:[#allocation5] sm:$0xf]
    %vm52 = vcmask 261120
    %v54 = vsel %vm52, %v50, 0
    %v57 = vsel %vm52, %v51, 0
    %59 = vmatprep.subr.mxu0 0.0
    %60 = vmatpush1.xpose.msra.mxu0 %v57
    %61 = vmatprep.subr.mxu0 0.0
    %62 = vmatpush1.xpose.msra.mxu0 0.0
    %63 = vmatprep.subr.mxu0 0.0
    %64 = vmatpush1.xpose.msra.mxu0 0.0
    %65 = vmatprep.subr.mxu0 0.0
    %66 = vmatpush1.xpose.msra.mxu0 0.0
    %67 = vmatprep.subr.mxu0 0.0
    %68 = vmatpush1.xpose.msra.mxu0 0.0
    %69 = vmatprep.subr.mxu0 0.0
    %70 = vmatpush1.xpose.msra.mxu0 0.0
    %71 = vmatprep.subr.mxu0 0.0
    %72 = vmatpush1.xpose.msra.mxu0 0.0
    %73 = vmatprep.subr.mxu0 0.0
    %74 = vmatpush1.xpose.msra.mxu0 0.0
    %75 = vmatprep.subr.mxu0 0.0
    %76 = vmatpush1.xpose.msra.mxu0 0.0
    %77 = vmatprep.subr.mxu0 0.0
    %78 = vmatpush1.xpose.msra.mxu0 0.0
    %79 = vmatprep.subr.mxu0 0.0
    %80 = vmatpush1.xpose.msra.mxu0 0.0
    %81 = vmatprep.subr.mxu0 0.0
    %82 = vmatpush1.xpose.msra.mxu0 0.0
    %83 = vmatprep.subr.mxu0 0.0
    %84 = vmatpush1.xpose.msra.mxu0 0.0
    %85 = vmatprep.subr.mxu0 0.0
    %86 = vmatpush1.xpose.msra.mxu0 0.0
    %87 = vmatprep.subr.mxu0 0.0
    %88 = vmatpush1.xpose.msra.mxu0 0.0
    %89 = vmatprep.subr.mxu0 0.0
    %90 = vmatpush1.xpose.msra.mxu0 0.0
    %91 = vmatprep.subr.mxu0 0.0
    %92 = vmatpush1.xpose.msra.mxu0 0.0
    %93 = vmatprep.subr.mxu0 0.0
    %94 = vmatpush1.xpose.msra.mxu0 0.0
    %95 = vmatprep.subr.mxu0 0.0
    %96 = vmatpush1.xpose.msra.mxu0 0.0
    %97 = vmatprep.subr.mxu0 0.0
    %98 = vmatpush1.xpose.msra.mxu0 0.0
    %99 = vmatprep.subr.mxu0 0.0
    %100 = vmatpush1.xpose.msra.mxu0 0.0
    %101 = vmatprep.subr.mxu0 0.0
    %102 = vmatpush1.xpose.msra.mxu0 0.0
    %103 = vmatprep.subr.mxu0 0.0
    %104 = vmatpush1.xpose.msra.mxu0 0.0
    %105 = vmatprep.subr.mxu0 0.0
    %106 = vmatpush1.xpose.msra.mxu0 0.0
    %107 = vmatprep.subr.mxu0 0.0
    %108 = vmatpush1.xpose.msra.mxu0 0.0
    %109 = vmatprep.subr.mxu0 0.0
    %110 = vmatpush1.xpose.msra.mxu0 0.0
    %111 = vmatprep.subr.mxu0 0.0
    %112 = vmatpush1.xpose.msra.mxu0 0.0
    %113 = vmatprep.subr.mxu0 0.0
    %114 = vmatpush1.xpose.msra.mxu0 0.0
    %115 = vmatprep.subr.mxu0 0.0
    %116 = vmatpush1.xpose.msra.mxu0 0.0
    %117 = vmatprep.subr.mxu0 0.0
    %118 = vmatpush1.xpose.msra.mxu0 0.0
    %119 = vmatprep.subr.mxu0 0.0
    %120 = vmatpush1.xpose.msra.mxu0 0.0
    %121 = vmatprep.subr.mxu0 0.0
    %122 = vmatpush1.xpose.msra.mxu0 0.0
    %123 = vmatprep.mubr.f32.mxu0 0.0
    %124 = vmatmul.mubr.f32.gmra.mrb[0].mxu0 %v54
    %v125 = vpop.f32.mrb[0].mxu0
    %v126 = vadd.f32 0.0, %v125
    %v127 = vpop.f32.mrb[0].mxu0
    %128 = vdwg.mxu0
    %v129 = vld [vmem:[#allocation7] sm:$0xf]
    %vm130 = vcmask 31744
    %v132 = vsel %vm130, %v126, 0
    %vm134 = vcmask 1043456
    %v136 = vsel %vm134, %v129, 0
    %138 = vmatprep.subr.mxu0 0.0
    %139 = vmatpush1.msra.mxu0 %v136
    %140 = vmatprep.subr.mxu0 0.0
    %141 = vmatpush1.msra.mxu0 0.0
    %142 = vmatprep.subr.mxu0 0.0
    %143 = vmatpush1.msra.mxu0 0.0
    %144 = vmatprep.subr.mxu0 0.0
    %145 = vmatpush1.msra.mxu0 0.0
    %146 = vmatprep.subr.mxu0 0.0
    %147 = vmatpush1.msra.mxu0 0.0
    %148 = vmatprep.subr.mxu0 0.0
    %149 = vmatpush1.msra.mxu0 0.0
    %150 = vmatprep.subr.mxu0 0.0
    %151 = vmatpush1.msra.mxu0 0.0
    %152 = vmatprep.subr.mxu0 0.0
    %153 = vmatpush1.msra.mxu0 0.0
    %154 = vmatprep.subr.mxu0 0.0
    %155 = vmatpush1.msra.mxu0 0.0
    %156 = vmatprep.subr.mxu0 0.0
    %157 = vmatpush1.msra.mxu0 0.0
    %158 = vmatprep.subr.mxu0 0.0
    %159 = vmatpush1.msra.mxu0 0.0
    %160 = vmatprep.subr.mxu0 0.0
    %161 = vmatpush1.msra.mxu0 0.0
    %162 = vmatprep.subr.mxu0 0.0
    %163 = vmatpush1.msra.mxu0 0.0
    %164 = vmatprep.subr.mxu0 0.0
    %165 = vmatpush1.msra.mxu0 0.0
    %166 = vmatprep.subr.mxu0 0.0
    %167 = vmatpush1.msra.mxu0 0.0
    %168 = vmatprep.subr.mxu0 0.0
    %169 = vmatpush1.msra.mxu0 0.0
    %170 = vmatprep.subr.mxu0 0.0
    %171 = vmatpush1.msra.mxu0 0.0
    %172 = vmatprep.subr.mxu0 0.0
    %173 = vmatpush1.msra.mxu0 0.0
    %174 = vmatprep.subr.mxu0 0.0
    %175 = vmatpush1.msra.mxu0 0.0
    %176 = vmatprep.subr.mxu0 0.0
    %177 = vmatpush1.msra.mxu0 0.0
    %178 = vmatprep.subr.mxu0 0.0
    %179 = vmatpush1.msra.mxu0 0.0
    %180 = vmatprep.subr.mxu0 0.0
    %181 = vmatpush1.msra.mxu0 0.0
    %182 = vmatprep.subr.mxu0 0.0
    %183 = vmatpush1.msra.mxu0 0.0
    %184 = vmatprep.subr.mxu0 0.0
    %185 = vmatpush1.msra.mxu0 0.0
    %186 = vmatprep.subr.mxu0 0.0
    %187 = vmatpush1.msra.mxu0 0.0
    %188 = vmatprep.subr.mxu0 0.0
    %189 = vmatpush1.msra.mxu0 0.0
    %190 = vmatprep.subr.mxu0 0.0
    %191 = vmatpush1.msra.mxu0 0.0
    %192 = vmatprep.subr.mxu0 0.0
    %193 = vmatpush1.msra.mxu0 0.0
    %194 = vmatprep.subr.mxu0 0.0
    %195 = vmatpush1.msra.mxu0 0.0
    %196 = vmatprep.subr.mxu0 0.0
    %197 = vmatpush1.msra.mxu0 0.0
    %198 = vmatprep.subr.mxu0 0.0
    %199 = vmatpush1.msra.mxu0 0.0
    %200 = vmatprep.subr.mxu0 0.0
    %201 = vmatpush1.msra.mxu0 0.0
    %202 = vmatprep.mubr.f32.mxu0 0.0
    %203 = vmatmul.mubr.f32.gmra.mrb[0].mxu0 %v132
    %v204 = vpop.f32.mrb[0].mxu0
    %v205 = vadd.f32 0.0, %v204
    %v206 = vpop.f32.mrb[0].mxu0
    %207 = vdwg.mxu0
    %208 = vst.msk [vmem:[#allocation8] sm:$0xff] %vm52, %v205
    // Predicated region
    $region26: #{tpu_custom_call.1} parent=1 // pred_check
      _
    $region27: #{tpu_custom_call.1} parent=1 // pred_check_branch
      %210 = sbr.rel (0) target = $region29
    $region28: #{tpu_custom_call.1} parent=1 // pred_region
      %s212 = ssub.s32 128, 128
      %213 = vsyncadd [#allocation4], %s212
      %s215 = sshll.u32 [#allocation8], 4
      %s216 = int_to_ptr.vmem [resolvable:$true] %s215
      %218 = dma.vmem_to_hbm [thread:$0]  %s216, 128, %s3, [#allocation4]
    $region29: #{tpu_custom_call.1} parent=1 // pred_fallthru
      _
    // Predicated region
    $region30: #{tpu_custom_call.1} parent=1 // pred_check
      _
    $region31: #{tpu_custom_call.1} parent=1 // pred_check_branch
      %220 = sbr.rel (0) target = $region33
    $region32: #{tpu_custom_call.1} parent=1 // pred_region
      %221 = dma.done [#allocation4], 128
    $region33: #{tpu_custom_call.1} parent=1 // pred_fallthru
      _
    %222 = vsyncpa [#allocation3], 1
    %223 = vsyncpa [#allocation6], 1
    %224 = vsyncpa [#allocation4], 1

</llo_original>
